<compile_context>
chip_gen: v7x
topology: tpu7x:2x2x1
jax: 0.10.0
libtpu: 0.0.40
codegen_flags: <defaults>
</compile_context>

<pallas_src>
import jax
import jax.numpy as jnp
from jax.experimental import pallas as pl
from jax.experimental.pallas import tpu as pltpu


# ----------------------------------------------------------------------------
# Kernel
# ----------------------------------------------------------------------------
def _make_cffn_kernel(n_layers, act, matmul_dtype):
    """n_layers = number of nn.Linear layers in self.lins (>= 2).

    Ref layout (all 2-D, batch on the last/lane axis):
        refs[0]            x_t    (n_in, TB)
        refs[1]            c_t    (context_in, TB)
        refs[2]            w_ctx  (h0, context_in)        -- bias-free context_lin
        refs[3 + 2*i]      w_i    (out_i, in_i)           -- PyTorch (out, in)
        refs[4 + 2*i]      b_i    (out_i, 1)
        refs[-1]           out    (n_out, TB)
    """

    def mm(w, h):
        # MXU matmul, f32 accumulation.  Optional in-kernel low-precision cast
        # (never done in the wrapper -> no extra HBM pass).
        if matmul_dtype is not None:
            w = w.astype(matmul_dtype)
            h = h.astype(matmul_dtype)
        return jnp.dot(w, h, preferred_element_type=jnp.float32)

    def kernel(*refs):
        x_ref, c_ref, wctx_ref = refs[0], refs[1], refs[2]
        wb = refs[3:3 + 2 * n_layers]
        o_ref = refs[-1]

        # Layer 0: lins[0](x) + context_lin(context) + b0, then activation.
        # Two dots summed in f32 instead of a wrapper-side [x|context] concat.
        h = mm(wb[0][...], x_ref[...]) + mm(wctx_ref[...], c_ref[...])
        h = act(h + wb[1][...])

        for i in range(1, n_layers):
            h = mm(wb[2 * i][...], h) + wb[2 * i + 1][...]
            if i < n_layers - 1:
                h = act(h)

        # Dense store: last dim is TB (multiple of 128) -> unmasked vst.
        o_ref[...] = h.astype(o_ref.dtype)

    return kernel


# ----------------------------------------------------------------------------
# Wrapper
# ----------------------------------------------------------------------------
def _round_up(v, m):
    return ((v + m - 1) // m) * m


def cffn_forward(x, context, w_ctx, weights, biases, act=jnp.tanh,
                 matmul_dtype=None, batch_tile=4096, single_block_max=1024,
                 vmem_budget_bytes=40 << 20):
    """
    x:       (B, n_in)           context: (B, context_in)
    w_ctx:   (h0, context_in)    -- PyTorch (out, in) layout, bias=False
    weights: list of (out_i, in_i)
    biases:  list of (out_i, 1)
    matmul_dtype: optional dtype for MXU inputs (cast INSIDE the kernel);
                  None (default) keeps f32 matmuls.
    Returns (B, n_in * out_mult), matching the PyTorch module.
    """
    n_layers = len(weights)
    B, n_in = x.shape
    context_in = context.shape[1]
    n_out = weights[-1].shape[0]
    out_dtype = x.dtype

    # Lane-dense compute layout: batch on the 128-lane axis.
    x_t = x.T                       # (n_in, B)
    c_t = context.T                 # (context_in, B)

    operands = [x_t, c_t, w_ctx]
    for w, b in zip(weights, biases):
        operands.append(w)
        operands.append(b)

    kernel = _make_cffn_kernel(n_layers, act, matmul_dtype)
    out_shape = jax.ShapeDtypeStruct((n_out, B), out_dtype)

    if B <= single_block_max:
        # Whole-array VMEM refs: no grid, no per-step pipeline overhead.
        # TODO(synk): on v7x a medium batch routed here runs on one TensorCore;
        # lower single_block_max if megacore sharding matters for your sizes.
        out_t = pl.pallas_call(
            kernel,
            out_shape=out_shape,
            in_specs=[pl.BlockSpec(memory_space=pltpu.MemorySpace.VMEM)
                      for _ in operands],
            out_specs=pl.BlockSpec(memory_space=pltpu.MemorySpace.VMEM),
        )(*operands)
        return out_t.T

    # ---- batch-tiled path: stream activations, keep weights resident -------
    # VMEM budget (v7x-safe, 64 MiB physical): streamed x/context/out tiles are
    # double-buffered (x2), intermediate activations single-buffered, all f32,
    # feature dims rounded up to the 8-sublane granule.
    feat_stream = (_round_up(n_in, 8) + _round_up(context_in, 8)
                   + _round_up(n_out, 8))
    feat_inter = sum(_round_up(w.shape[0], 8) for w in weights)
    bytes_per_col = 4 * (2 * feat_stream + feat_inter)
    tb_cap = max(128, (vmem_budget_bytes // bytes_per_col) // 128 * 128)

    TB = min(batch_tile, tb_cap)
    # Keep >= 2 grid steps so the "parallel" batch axis can use both v7x TCs.
    TB = min(TB, _round_up(pl.cdiv(B, 2), 128))
    TB = max(TB, 128)

    grid = (pl.cdiv(B, TB),)

    in_specs = [
        pl.BlockSpec((n_in, TB), lambda i: (0, i)),          # x_t tile
        pl.BlockSpec((context_in, TB), lambda i: (0, i)),    # context_t tile
    ]
    # Weights / biases: full-extent blocks with constant index_maps -> DMA'd
    # once and VMEM-resident across the whole grid.  (pipeline_mode=
    # pl.Buffered(1) would halve their double-buffer footprint; skipped here
    # since they total only a few KiB at these hidden sizes.)
    for op in operands[2:]:
        in_specs.append(pl.BlockSpec(op.shape, lambda i: (0, 0)))
    out_specs = pl.BlockSpec((n_out, TB), lambda i: (0, i))

    # Note: if B % TB != 0 the padded tail lanes of the last tile hold garbage;
    # tanh is bounded and the partial writeback is masked, so this is harmless.
    out_t = pl.pallas_call(
        kernel,
        out_shape=out_shape,
        grid=grid,
        in_specs=in_specs,
        out_specs=out_specs,
        compiler_params=pltpu.CompilerParams(
            dimension_semantics=("parallel",),
            vmem_limit_bytes=48 << 20,          # safe on v5e/v6e (128 MiB) and v7x (64 MiB)
        ),
    )(*operands)
    return out_t.T


# ----------------------------------------------------------------------------
# Deterministic parameter construction (PyTorch Linear-style uniform init,
# weights kept in the native PyTorch (out, in) layout)
# ----------------------------------------------------------------------------
def _linear_params(key, fan_in, fan_out, bias=True):
    bound = 1.0 / (float(fan_in) ** 0.5)
    kw, kb = jax.random.split(key)
    w = jax.random.uniform(kw, (fan_out, fan_in), jnp.float32, -bound, bound)
    if not bias:
        return w, None
    b = jax.random.uniform(kb, (fan_out, 1), jnp.float32, -bound, bound)
    return w, b


def make_cffn_params(key, n_in, context_in, hidden_dims, out_mult):
    keys = jax.random.split(key, len(hidden_dims) + 2)
    w_ctx, _ = _linear_params(keys[0], context_in, hidden_dims[0], bias=False)

    dims_in = (n_in,) + tuple(hidden_dims)
    dims_out = tuple(hidden_dims) + (n_in * out_mult,)
    weights, biases = [], []
    for i, (di, do) in enumerate(zip(dims_in, dims_out)):
        w, b = _linear_params(keys[i + 1], di, do, bias=True)
        weights.append(w)
        biases.append(b)
    return w_ctx, weights, biases


# ----------------------------------------------------------------------------
# Pure-JAX reference (mirrors the PyTorch forward exactly, f32)
# ----------------------------------------------------------------------------
def cffn_reference(x, context, w_ctx, weights, biases, act=jnp.tanh):
    h = act(x @ weights[0].T + context @ w_ctx.T + biases[0].T)
    for i in range(1, len(weights) - 1):
        h = act(h @ weights[i].T + biases[i].T)
    return h @ weights[-1].T + biases[-1].T


# ----------------------------------------------------------------------------
if __name__ == "__main__":
    n_in = 4
    context_in = 6
    hidden_dims = (32, 16)
    out_mult = 2           # output dim = n_in * out_mult = 8
    act = jnp.tanh         # self.act

    key = jax.random.PRNGKey(0)
    k_x, k_c, k_p = jax.random.split(key, 3)

    w_ctx, weights, biases = make_cffn_params(
        k_p, n_in, context_in, hidden_dims, out_mult)

    # ---- small batch: single-block (no-grid) path, f32 matmuls -------------
    B = 8
    x = jax.random.normal(k_x, (B, n_in), jnp.float32)
    context = jax.random.normal(k_c, (B, context_in), jnp.float32)

    out = cffn_forward(x, context, w_ctx, weights, biases, act=act)
    out = jax.block_until_ready(out)
    ref = cffn_reference(x, context, w_ctx, weights, biases, act=act)
    assert out.shape == (B, n_in * out_mult), out.shape
    assert jnp.allclose(out, ref, atol=1e-5, rtol=1e-5), (
        float(jnp.max(jnp.abs(out - ref))))

    # ---- larger batch: lane-dense batch-tiled path (weights VMEM-resident,
    #      >=2 "parallel" grid steps for v7x megacore), f32 matmuls -----------
    B_big = 2048
    xb = jax.random.normal(k_x, (B_big, n_in), jnp.float32)
    cb = jax.random.normal(k_c, (B_big, context_in), jnp.float32)

    out_b = cffn_forward(xb, cb, w_ctx, weights, biases, act=act)
    out_b = jax.block_until_ready(out_b)
    ref_b = cffn_reference(xb, cb, w_ctx, weights, biases, act=act)
    assert out_b.shape == (B_big, n_in * out_mult), out_b.shape
    assert jnp.allclose(out_b, ref_b, atol=1e-5, rtol=1e-5), (
        float(jnp.max(jnp.abs(out_b - ref_b))))

    print("KERNEL_OK")
</pallas_src>

<mosaic_0001>
module attributes {stable_mosaic.version = 11 : i64} {
  func.func @kernel(%arg0: memref<4x8xf32, #tpu.memory_space<vmem>>, %arg1: memref<6x8xf32, #tpu.memory_space<vmem>>, %arg2: memref<32x6xf32, #tpu.memory_space<vmem>>, %arg3: memref<32x4xf32, #tpu.memory_space<vmem>>, %arg4: memref<32x1xf32, #tpu.memory_space<vmem>>, %arg5: memref<16x32xf32, #tpu.memory_space<vmem>>, %arg6: memref<16x1xf32, #tpu.memory_space<vmem>>, %arg7: memref<8x16xf32, #tpu.memory_space<vmem>>, %arg8: memref<8x1xf32, #tpu.memory_space<vmem>>, %arg9: memref<8x8xf32, #tpu.memory_space<vmem>>) attributes {dimension_semantics = [], scalar_prefetch = 0 : i64, scratch_operands = 0 : i64, tpu.core_type = #tpu.core_type<tc>} {
    %c0 = arith.constant 0 : index
    %c0_0 = arith.constant 0 : index
    %0 = vector.load %arg3[%c0, %c0_0] : memref<32x4xf32, #tpu.memory_space<vmem>>, vector<32x4xf32>
    %c0_1 = arith.constant 0 : index
    %c0_2 = arith.constant 0 : index
    %1 = vector.load %arg0[%c0_1, %c0_2] : memref<4x8xf32, #tpu.memory_space<vmem>>, vector<4x8xf32>
    %cst = arith.constant dense<0.000000e+00> : vector<32x8xf32>
    %2 = tpu.matmul %0, %1, %cst {dimension_numbers = #tpu.dot_dimension_numbers<[1], [0], [0], [1], [0, 0, 1, 1], [], []>} : vector<32x4xf32>, vector<4x8xf32>, vector<32x8xf32> -> vector<32x8xf32>
    %c0_3 = arith.constant 0 : index
    %c0_4 = arith.constant 0 : index
    %3 = vector.load %arg2[%c0_3, %c0_4] : memref<32x6xf32, #tpu.memory_space<vmem>>, vector<32x6xf32>
    %c0_5 = arith.constant 0 : index
    %c0_6 = arith.constant 0 : index
    %4 = vector.load %arg1[%c0_5, %c0_6] : memref<6x8xf32, #tpu.memory_space<vmem>>, vector<6x8xf32>
    %cst_7 = arith.constant dense<0.000000e+00> : vector<32x8xf32>
    %5 = tpu.matmul %3, %4, %cst_7 {dimension_numbers = #tpu.dot_dimension_numbers<[1], [0], [0], [1], [0, 0, 1, 1], [], []>} : vector<32x6xf32>, vector<6x8xf32>, vector<32x8xf32> -> vector<32x8xf32>
    %6 = arith.addf %2, %5 : vector<32x8xf32>
    %c0_8 = arith.constant 0 : index
    %c0_9 = arith.constant 0 : index
    %7 = vector.load %arg4[%c0_8, %c0_9] : memref<32x1xf32, #tpu.memory_space<vmem>>, vector<32x1xf32>
    %8 = vector.broadcast %7 : vector<32x1xf32> to vector<32x8xf32>
    %9 = arith.addf %6, %8 : vector<32x8xf32>
    %10 = math.tanh %9 : vector<32x8xf32>
    %c0_10 = arith.constant 0 : index
    %c0_11 = arith.constant 0 : index
    %11 = vector.load %arg5[%c0_10, %c0_11] : memref<16x32xf32, #tpu.memory_space<vmem>>, vector<16x32xf32>
    %cst_12 = arith.constant dense<0.000000e+00> : vector<16x8xf32>
    %12 = tpu.matmul %11, %10, %cst_12 {dimension_numbers = #tpu.dot_dimension_numbers<[1], [0], [0], [1], [0, 0, 1, 1], [], []>} : vector<16x32xf32>, vector<32x8xf32>, vector<16x8xf32> -> vector<16x8xf32>
    %c0_13 = arith.constant 0 : index
    %c0_14 = arith.constant 0 : index
    %13 = vector.load %arg6[%c0_13, %c0_14] : memref<16x1xf32, #tpu.memory_space<vmem>>, vector<16x1xf32>
    %14 = vector.broadcast %13 : vector<16x1xf32> to vector<16x8xf32>
    %15 = arith.addf %12, %14 : vector<16x8xf32>
    %16 = math.tanh %15 : vector<16x8xf32>
    %c0_15 = arith.constant 0 : index
    %c0_16 = arith.constant 0 : index
    %17 = vector.load %arg7[%c0_15, %c0_16] : memref<8x16xf32, #tpu.memory_space<vmem>>, vector<8x16xf32>
    %cst_17 = arith.constant dense<0.000000e+00> : vector<8x8xf32>
    %18 = tpu.matmul %17, %16, %cst_17 {dimension_numbers = #tpu.dot_dimension_numbers<[1], [0], [0], [1], [0, 0, 1, 1], [], []>} : vector<8x16xf32>, vector<16x8xf32>, vector<8x8xf32> -> vector<8x8xf32>
    %c0_18 = arith.constant 0 : index
    %c0_19 = arith.constant 0 : index
    %19 = vector.load %arg8[%c0_18, %c0_19] : memref<8x1xf32, #tpu.memory_space<vmem>>, vector<8x1xf32>
    %20 = vector.broadcast %19 : vector<8x1xf32> to vector<8x8xf32>
    %21 = arith.addf %18, %20 : vector<8x8xf32>
    %c0_20 = arith.constant 0 : index
    %c0_21 = arith.constant 0 : index
    %22 = vector.load %arg9[%c0_20, %c0_21] : memref<8x8xf32, #tpu.memory_space<vmem>>, vector<8x8xf32>
    tpu.vector_store %arg9[%c0_20, %c0_21], %21 {strides = array<i32>} : memref<8x8xf32, #tpu.memory_space<vmem>>, vector<8x8xf32>,
    return
  }
}

</mosaic_0001>

<llo_original>
// kernel: tpu_custom_call.1
$region0: #{tpu_custom_call.1}
  #allocation0 [shape = 'u32[]', space=smem, size = 0x4, offset = 0x4, fixed_abs, tag = 'smem constant byte address 0x4 - core index']
  #allocation1 [shape = 'u32[144,128]{1,0:T(1,128)}', space=vmem, size = 0x12000, scoped, tag = 'internal scratch']
  %s0 = inlined_call_operand.vmem [shape: f32[4,8], index: 0, kind: input, shape index: {}]
  %s1 = inlined_call_operand.vmem [shape: f32[6,8], index: 1, kind: input, shape index: {}]
  %s2 = inlined_call_operand.vmem [shape: f32[32,6], index: 2, kind: input, shape index: {}]
  %s3 = inlined_call_operand.vmem [shape: f32[32,4], index: 3, kind: input, shape index: {}]
  %s4 = inlined_call_operand.vmem [shape: f32[32,1], index: 4, kind: input, shape index: {}]
  %s5 = inlined_call_operand.vmem [shape: f32[16,32], index: 5, kind: input, shape index: {}]
  %s6 = inlined_call_operand.vmem [shape: f32[16,1], index: 6, kind: input, shape index: {}]
  %s7 = inlined_call_operand.vmem [shape: f32[8,16], index: 7, kind: input, shape index: {}]
  %s8 = inlined_call_operand.vmem [shape: f32[8,1], index: 8, kind: input, shape index: {}]
  %s9 = inlined_call_operand.hbm [shape: f32[8,8], index: 9, kind: output, shape index: {}]
  %s10 = sld [smem:[#allocation0]]
  $region46: #{tpu_custom_call.1} parent=0
    _
  %s12 = ssub.s32 1, %s10
  %s13 = scalar_select 0, %s12, %s10
  $region1: #{tpu_custom_call.1} parent=0
    #allocation2 [shape = 'u8[4096]{0}', space=vmem, size = 0x1000, scoped, tag = 'output window, operand 0, single buffered']
    #allocation3 [shape = 's32[1]{0}', space=sflag, size = 0x4, scoped, tag = 'scoped memory for tpu_custom_call.1']
    %14 = vsyncpa [#allocation3], 0
    // Predicated region
    $region2: #{tpu_custom_call.1} parent=1 // pred_check
      _
    $region3: #{tpu_custom_call.1} parent=1 // pred_check_branch
      %16 = sbr.rel (0) target = $region5
    $region4: #{tpu_custom_call.1} parent=1 // pred_region
      _
    $region5: #{tpu_custom_call.1} parent=1 // pred_fallthru
      _
    // Predicated region
    $region6: #{tpu_custom_call.1} parent=1 // pred_check
      _
    $region7: #{tpu_custom_call.1} parent=1 // pred_check_branch
      %18 = sbr.rel (0) target = $region9
    $region8: #{tpu_custom_call.1} parent=1 // pred_region
      _
    $region9: #{tpu_custom_call.1} parent=1 // pred_fallthru
      _
    // Predicated region
    $region10: #{tpu_custom_call.1} parent=1 // pred_check
      _
    $region11: #{tpu_custom_call.1} parent=1 // pred_check_branch
      %20 = sbr.rel (0) target = $region13
    $region12: #{tpu_custom_call.1} parent=1 // pred_region
      _
    $region13: #{tpu_custom_call.1} parent=1 // pred_fallthru
      _
    // Predicated region
    $region14: #{tpu_custom_call.1} parent=1 // pred_check
      _
    $region15: #{tpu_custom_call.1} parent=1 // pred_check_branch
      %22 = sbr.rel (0) target = $region17
    $region16: #{tpu_custom_call.1} parent=1 // pred_region
      _
    $region17: #{tpu_custom_call.1} parent=1 // pred_fallthru
      _
    // Predicated region
    $region18: #{tpu_custom_call.1} parent=1 // pred_check
      _
    $region19: #{tpu_custom_call.1} parent=1 // pred_check_branch
      %24 = sbr.rel (0) target = $region21
    $region20: #{tpu_custom_call.1} parent=1 // pred_region
      _
    $region21: #{tpu_custom_call.1} parent=1 // pred_fallthru
      _
    // Predicated region
    $region22: #{tpu_custom_call.1} parent=1 // pred_check
      _
    $region23: #{tpu_custom_call.1} parent=1 // pred_check_branch
      %26 = sbr.rel (0) target = $region25
    $region24: #{tpu_custom_call.1} parent=1 // pred_region
      _
    $region25: #{tpu_custom_call.1} parent=1 // pred_fallthru
      _
    // Predicated region
    $region26: #{tpu_custom_call.1} parent=1 // pred_check
      _
    $region27: #{tpu_custom_call.1} parent=1 // pred_check_branch
      %28 = sbr.rel (0) target = $region29
    $region28: #{tpu_custom_call.1} parent=1 // pred_region
      _
    $region29: #{tpu_custom_call.1} parent=1 // pred_fallthru
      _
    // Predicated region
    $region30: #{tpu_custom_call.1} parent=1 // pred_check
      _
    $region31: #{tpu_custom_call.1} parent=1 // pred_check_branch
      %30 = sbr.rel (0) target = $region33
    $region32: #{tpu_custom_call.1} parent=1 // pred_region
      _
    $region33: #{tpu_custom_call.1} parent=1 // pred_fallthru
      _
    // Predicated region
    $region34: #{tpu_custom_call.1} parent=1 // pred_check
      _
    $region35: #{tpu_custom_call.1} parent=1 // pred_check_branch
      %32 = sbr.rel (0) target = $region37
    $region36: #{tpu_custom_call.1} parent=1 // pred_region
      _
    $region37: #{tpu_custom_call.1} parent=1 // pred_fallthru
      _
    %v33 = vld [vmem:[%s3] sm:$0xff]
    %v34 = vld [vmem:[%s3 + $0x8] sm:$0xff]
    %v35 = vld [vmem:[%s3 + $0x10] sm:$0xff]
    %v36 = vld [vmem:[%s3 + $0x18] sm:$0xff]
    %v37 = vld [vmem:[%s0] sm:$0xf]
    %v38 = vld [vmem:[%s2] sm:$0xff]
    %v39 = vld [vmem:[%s2 + $0x8] sm:$0xff]
    %v40 = vld [vmem:[%s2 + $0x10] sm:$0xff]
    %v41 = vld [vmem:[%s2 + $0x18] sm:$0xff]
    %v42 = vld [vmem:[%s1] sm:$0x3f]
    %vm43 = vcmask 48128
    %v45 = vsel %vm43, %v38, 0
    %v48 = vsel %vm43, %v39, 0
    %v51 = vsel %vm43, %v40, 0
    %v54 = vsel %vm43, %v41, 0
    %vm56 = vcmask 1045504
    %v58 = vsel %vm56, %v42, 0
    %60 = vmatprep.subr.mxu0 0.0
    %61 = vmatpush1.msra.mxu0 %v58
    %62 = vmatprep.subr.mxu0 0.0
    %63 = vmatpush1.msra.mxu0 0.0
    %64 = vmatprep.subr.mxu0 0.0
    %65 = vmatpush1.msra.mxu0 0.0
    %66 = vmatprep.subr.mxu0 0.0
    %67 = vmatpush1.msra.mxu0 0.0
    %68 = vmatprep.subr.mxu0 0.0
    %69 = vmatpush1.msra.mxu0 0.0
    %70 = vmatprep.subr.mxu0 0.0
    %71 = vmatpush1.msra.mxu0 0.0
    %72 = vmatprep.subr.mxu0 0.0
    %73 = vmatpush1.msra.mxu0 0.0
    %74 = vmatprep.subr.mxu0 0.0
    %75 = vmatpush1.msra.mxu0 0.0
    %76 = vmatprep.subr.mxu0 0.0
    %77 = vmatpush1.msra.mxu0 0.0
    %78 = vmatprep.subr.mxu0 0.0
    %79 = vmatpush1.msra.mxu0 0.0
    %80 = vmatprep.subr.mxu0 0.0
    %81 = vmatpush1.msra.mxu0 0.0
    %82 = vmatprep.subr.mxu0 0.0
    %83 = vmatpush1.msra.mxu0 0.0
    %84 = vmatprep.subr.mxu0 0.0
    %85 = vmatpush1.msra.mxu0 0.0
    %86 = vmatprep.subr.mxu0 0.0
    %87 = vmatpush1.msra.mxu0 0.0
    %88 = vmatprep.subr.mxu0 0.0
    %89 = vmatpush1.msra.mxu0 0.0
    %90 = vmatprep.subr.mxu0 0.0
    %91 = vmatpush1.msra.mxu0 0.0
    %92 = vmatprep.subr.mxu0 0.0
    %93 = vmatpush1.msra.mxu0 0.0
    %94 = vmatprep.subr.mxu0 0.0
    %95 = vmatpush1.msra.mxu0 0.0
    %96 = vmatprep.subr.mxu0 0.0
    %97 = vmatpush1.msra.mxu0 0.0
    %98 = vmatprep.subr.mxu0 0.0
    %99 = vmatpush1.msra.mxu0 0.0
    %100 = vmatprep.subr.mxu0 0.0
    %101 = vmatpush1.msra.mxu0 0.0
    %102 = vmatprep.subr.mxu0 0.0
    %103 = vmatpush1.msra.mxu0 0.0
    %104 = vmatprep.subr.mxu0 0.0
    %105 = vmatpush1.msra.mxu0 0.0
    %106 = vmatprep.subr.mxu0 0.0
    %107 = vmatpush1.msra.mxu0 0.0
    %108 = vmatprep.subr.mxu0 0.0
    %109 = vmatpush1.msra.mxu0 0.0
    %110 = vmatprep.subr.mxu0 0.0
    %111 = vmatpush1.msra.mxu0 0.0
    %112 = vmatprep.subr.mxu0 0.0
    %113 = vmatpush1.msra.mxu0 0.0
    %114 = vmatprep.subr.mxu0 0.0
    %115 = vmatpush1.msra.mxu0 0.0
    %116 = vmatprep.subr.mxu0 0.0
    %117 = vmatpush1.msra.mxu0 0.0
    %118 = vmatprep.subr.mxu0 0.0
    %119 = vmatpush1.msra.mxu0 0.0
    %120 = vmatprep.subr.mxu0 0.0
    %121 = vmatpush1.msra.mxu0 0.0
    %122 = vmatprep.subr.mxu0 0.0
    %123 = vmatpush1.msra.mxu0 0.0
    %124 = vmatprep.mubr.f32.mxu0 0.0
    %125 = vmatmul.mubr.f32.gmra.mrb[0].mxu0 %v45
    %v126 = vpop.f32.mrb[0].mxu0
    %v127 = vadd.f32 0.0, %v126
    %v128 = vpop.f32.mrb[0].mxu0
    %129 = vmatprep.mubr.f32.mxu0 0.0
    %130 = vmatmul.mubr.f32.gmra.mrb[0].mxu0 %v48
    %v131 = vpop.f32.mrb[0].mxu0
    %v132 = vadd.f32 0.0, %v131
    %v133 = vpop.f32.mrb[0].mxu0
    %134 = vmatprep.mubr.f32.mxu0 0.0
    %135 = vmatmul.mubr.f32.gmra.mrb[0].mxu0 %v51
    %v136 = vpop.f32.mrb[0].mxu0
    %v137 = vadd.f32 0.0, %v136
    %v138 = vpop.f32.mrb[0].mxu0
    %139 = vmatprep.mubr.f32.mxu0 0.0
    %140 = vmatmul.mubr.f32.gmra.mrb[0].mxu0 %v54
    %v141 = vpop.f32.mrb[0].mxu0
    %v142 = vadd.f32 0.0, %v141
    %v143 = vpop.f32.mrb[0].mxu0
    %144 = vdwg.mxu0
    %vm145 = vcmask 31744
    %v147 = vsel %vm145, %v33, 0
    %v150 = vsel %vm145, %v34, 0
    %v153 = vsel %vm145, %v35, 0
    %v156 = vsel %vm145, %v36, 0
    %vm158 = vcmask 1043456
    %v160 = vsel %vm158, %v37, 0
    %162 = vmatprep.subr.mxu0 0.0
    %163 = vmatpush1.msra.mxu0 %v160
    %164 = vmatprep.subr.mxu0 0.0
    %165 = vmatpush1.msra.mxu0 0.0
    %166 = vmatprep.subr.mxu0 0.0
    %167 = vmatpush1.msra.mxu0 0.0
    %168 = vmatprep.subr.mxu0 0.0
    %169 = vmatpush1.msra.mxu0 0.0
    %170 = vmatprep.subr.mxu0 0.0
    %171 = vmatpush1.msra.mxu0 0.0
    %172 = vmatprep.subr.mxu0 0.0
    %173 = vmatpush1.msra.mxu0 0.0
    %174 = vmatprep.subr.mxu0 0.0
    %175 = vmatpush1.msra.mxu0 0.0
    %176 = vmatprep.subr.mxu0 0.0
    %177 = vmatpush1.msra.mxu0 0.0
    %178 = vmatprep.subr.mxu0 0.0
    %179 = vmatpush1.msra.mxu0 0.0
    %180 = vmatprep.subr.mxu0 0.0
    %181 = vmatpush1.msra.mxu0 0.0
    %182 = vmatprep.subr.mxu0 0.0
    %183 = vmatpush1.msra.mxu0 0.0
    %184 = vmatprep.subr.mxu0 0.0
    %185 = vmatpush1.msra.mxu0 0.0
    %186 = vmatprep.subr.mxu0 0.0
    %187 = vmatpush1.msra.mxu0 0.0
    %188 = vmatprep.subr.mxu0 0.0
    %189 = vmatpush1.msra.mxu0 0.0
    %190 = vmatprep.subr.mxu0 0.0
    %191 = vmatpush1.msra.mxu0 0.0
    %192 = vmatprep.subr.mxu0 0.0
    %193 = vmatpush1.msra.mxu0 0.0
    %194 = vmatprep.subr.mxu0 0.0
    %195 = vmatpush1.msra.mxu0 0.0
    %196 = vmatprep.subr.mxu0 0.0
    %197 = vmatpush1.msra.mxu0 0.0
    %198 = vmatprep.subr.mxu0 0.0
    %199 = vmatpush1.msra.mxu0 0.0
    %200 = vmatprep.subr.mxu0 0.0
    %201 = vmatpush1.msra.mxu0 0.0
    %202 = vmatprep.subr.mxu0 0.0
    %203 = vmatpush1.msra.mxu0 0.0
    %204 = vmatprep.subr.mxu0 0.0
    %205 = vmatpush1.msra.mxu0 0.0
    %206 = vmatprep.subr.mxu0 0.0
    %207 = vmatpush1.msra.mxu0 0.0
    %208 = vmatprep.subr.mxu0 0.0
    %209 = vmatpush1.msra.mxu0 0.0
    %210 = vmatprep.subr.mxu0 0.0
    %211 = vmatpush1.msra.mxu0 0.0
    %212 = vmatprep.subr.mxu0 0.0
    %213 = vmatpush1.msra.mxu0 0.0
    %214 = vmatprep.subr.mxu0 0.0
    %215 = vmatpush1.msra.mxu0 0.0
    %216 = vmatprep.subr.mxu0 0.0
    %217 = vmatpush1.msra.mxu0 0.0
    %218 = vmatprep.subr.mxu0 0.0
    %219 = vmatpush1.msra.mxu0 0.0
    %220 = vmatprep.subr.mxu0 0.0
    %221 = vmatpush1.msra.mxu0 0.0
    %222 = vmatprep.subr.mxu0 0.0
    %223 = vmatpush1.msra.mxu0 0.0
    %224 = vmatprep.subr.mxu0 0.0
    %225 = vmatpush1.msra.mxu0 0.0
    %226 = vmatprep.mubr.f32.mxu0 0.0
    %227 = vmatmul.mubr.f32.gmra.mrb[0].mxu0 %v147
    %v228 = vpop.f32.mrb[0].mxu0
    %v229 = vadd.f32 %v127, %v228
    %v230 = vpop.f32.mrb[0].mxu0
    %231 = vmatprep.mubr.f32.mxu0 0.0
    %232 = vmatmul.mubr.f32.gmra.mrb[0].mxu0 %v150
    %v233 = vpop.f32.mrb[0].mxu0
    %v234 = vadd.f32 %v132, %v233
    %v235 = vpop.f32.mrb[0].mxu0
    %236 = vmatprep.mubr.f32.mxu0 0.0
    %237 = vmatmul.mubr.f32.gmra.mrb[0].mxu0 %v153
    %v238 = vpop.f32.mrb[0].mxu0
    %v239 = vadd.f32 %v137, %v238
    %v240 = vpop.f32.mrb[0].mxu0
    %241 = vmatprep.mubr.f32.mxu0 0.0
    %242 = vmatmul.mubr.f32.gmra.mrb[0].mxu0 %v156
    %v243 = vpop.f32.mrb[0].mxu0
    %v244 = vadd.f32 %v142, %v243
    %v245 = vpop.f32.mrb[0].mxu0
    %246 = vdwg.mxu0
    %v247 = vld [vmem:[%s4] sm:$0xff]
    %v248 = vld [vmem:[%s4 + $0x8] sm:$0xff]
    %v249 = vld [vmem:[%s4 + $0x10] sm:$0xff]
    %v250 = vld [vmem:[%s4 + $0x18] sm:$0xff]
    %252 = vset.pattern.permute.xlu0 0
    %253 = vperm.xlu0 %252, %v247
    %v254 = vpop.permute.xlu0 %253
    %257 = vset.pattern.permute.xlu0 0
    %258 = vperm.xlu0 %257, %v248
    %v259 = vpop.permute.xlu0 %258
    %262 = vset.pattern.permute.xlu0 0
    %263 = vperm.xlu0 %262, %v249
    %v264 = vpop.permute.xlu0 %263
    %267 = vset.pattern.permute.xlu0 0
    %268 = vperm.xlu0 %267, %v250
    %v269 = vpop.permute.xlu0 %268
    %v271 = vadd.f32 %v229, %v254
    %v272 = vadd.f32 %v234, %v259
    %v273 = vadd.f32 %v239, %v264
    %v274 = vadd.f32 %v244, %v269
    %v275 = vtanh.pop %v271
    %v276 = vtanh.pop %v272
    %v277 = vtanh.pop %v273
    %v278 = vtanh.pop %v274
    %v279 = vld [vmem:[%s5] sm:$0xff]
    %v280 = vld [vmem:[%s5 + $0x8] sm:$0xff]
    %v281 = vld [vmem:[%s6] sm:$0xff]
    %v282 = vld [vmem:[%s6 + $0x8] sm:$0xff]
    %284 = vset.pattern.permute.xlu0 0
    %285 = vperm.xlu0 %284, %v281
    %v286 = vpop.permute.xlu0 %285
    %289 = vset.pattern.permute.xlu0 0
    %290 = vperm.xlu0 %289, %v282
    %v291 = vpop.permute.xlu0 %290
    %vm293 = vcmask 261120
    %v295 = vsel %vm293, %v279, 0
    %v298 = vsel %vm293, %v280, 0
    %300 = vmatprep.subr.mxu0 0.0
    %301 = vmatpush1.msra.mxu0 %v275
    %302 = vmatprep.subr.mxu0 0.0
    %303 = vmatpush1.msra.mxu0 %v276
    %304 = vmatprep.subr.mxu0 0.0
    %305 = vmatpush1.msra.mxu0 %v277
    %306 = vmatprep.subr.mxu0 0.0
    %307 = vmatpush1.msra.mxu0 %v278
    %308 = vmatprep.subr.mxu0 0.0
    %309 = vmatpush1.msra.mxu0 0.0
    %310 = vmatprep.subr.mxu0 0.0
    %311 = vmatpush1.msra.mxu0 0.0
    %312 = vmatprep.subr.mxu0 0.0
    %313 = vmatpush1.msra.mxu0 0.0
    %314 = vmatprep.subr.mxu0 0.0
    %315 = vmatpush1.msra.mxu0 0.0
    %316 = vmatprep.subr.mxu0 0.0
    %317 = vmatpush1.msra.mxu0 0.0
    %318 = vmatprep.subr.mxu0 0.0
    %319 = vmatpush1.msra.mxu0 0.0
    %320 = vmatprep.subr.mxu0 0.0
    %321 = vmatpush1.msra.mxu0 0.0
    %322 = vmatprep.subr.mxu0 0.0
    %323 = vmatpush1.msra.mxu0 0.0
    %324 = vmatprep.subr.mxu0 0.0
    %325 = vmatpush1.msra.mxu0 0.0
    %326 = vmatprep.subr.mxu0 0.0
    %327 = vmatpush1.msra.mxu0 0.0
    %328 = vmatprep.subr.mxu0 0.0
    %329 = vmatpush1.msra.mxu0 0.0
    %330 = vmatprep.subr.mxu0 0.0
    %331 = vmatpush1.msra.mxu0 0.0
    %332 = vmatprep.subr.mxu0 0.0
    %333 = vmatpush1.msra.mxu0 0.0
    %334 = vmatprep.subr.mxu0 0.0
    %335 = vmatpush1.msra.mxu0 0.0
    %336 = vmatprep.subr.mxu0 0.0
    %337 = vmatpush1.msra.mxu0 0.0
    %338 = vmatprep.subr.mxu0 0.0
    %339 = vmatpush1.msra.mxu0 0.0
    %340 = vmatprep.subr.mxu0 0.0
    %341 = vmatpush1.msra.mxu0 0.0
    %342 = vmatprep.subr.mxu0 0.0
    %343 = vmatpush1.msra.mxu0 0.0
    %344 = vmatprep.subr.mxu0 0.0
    %345 = vmatpush1.msra.mxu0 0.0
    %346 = vmatprep.subr.mxu0 0.0
    %347 = vmatpush1.msra.mxu0 0.0
    %348 = vmatprep.subr.mxu0 0.0
    %349 = vmatpush1.msra.mxu0 0.0
    %350 = vmatprep.subr.mxu0 0.0
    %351 = vmatpush1.msra.mxu0 0.0
    %352 = vmatprep.subr.mxu0 0.0
    %353 = vmatpush1.msra.mxu0 0.0
    %354 = vmatprep.subr.mxu0 0.0
    %355 = vmatpush1.msra.mxu0 0.0
    %356 = vmatprep.subr.mxu0 0.0
    %357 = vmatpush1.msra.mxu0 0.0
    %358 = vmatprep.subr.mxu0 0.0
    %359 = vmatpush1.msra.mxu0 0.0
    %360 = vmatprep.subr.mxu0 0.0
    %361 = vmatpush1.msra.mxu0 0.0
    %362 = vmatprep.subr.mxu0 0.0
    %363 = vmatpush1.msra.mxu0 0.0
    %364 = vmatprep.mubr.f32.mxu0 0.0
    %365 = vmatmul.mubr.f32.gmra.mrb[0].mxu0 %v295
    %v366 = vpop.f32.mrb[0].mxu0
    %v367 = vadd.f32 %v286, %v366
    %v368 = vpop.f32.mrb[0].mxu0
    %369 = vmatprep.mubr.f32.mxu0 0.0
    %370 = vmatmul.mubr.f32.gmra.mrb[0].mxu0 %v298
    %v371 = vpop.f32.mrb[0].mxu0
    %v372 = vadd.f32 %v291, %v371
    %v373 = vpop.f32.mrb[0].mxu0
    %374 = vdwg.mxu0
    %v375 = vtanh.pop %v367
    %v376 = vtanh.pop %v372
    %v377 = vld [vmem:[%s7] sm:$0xff]
    %v378 = vld [vmem:[%s8] sm:$0xff]
    %380 = vset.pattern.permute.xlu0 0
    %381 = vperm.xlu0 %380, %v378
    %v382 = vpop.permute.xlu0 %381
    %vm384 = vcmask 130048
    %v386 = vsel %vm384, %v377, 0
    %388 = vmatprep.subr.mxu0 0.0
    %389 = vmatpush1.msra.mxu0 %v375
    %390 = vmatprep.subr.mxu0 0.0
    %391 = vmatpush1.msra.mxu0 %v376
    %392 = vmatprep.subr.mxu0 0.0
    %393 = vmatpush1.msra.mxu0 0.0
    %394 = vmatprep.subr.mxu0 0.0
    %395 = vmatpush1.msra.mxu0 0.0
    %396 = vmatprep.subr.mxu0 0.0
    %397 = vmatpush1.msra.mxu0 0.0
    %398 = vmatprep.subr.mxu0 0.0
    %399 = vmatpush1.msra.mxu0 0.0
    %400 = vmatprep.subr.mxu0 0.0
    %401 = vmatpush1.msra.mxu0 0.0
    %402 = vmatprep.subr.mxu0 0.0
    %403 = vmatpush1.msra.mxu0 0.0
    %404 = vmatprep.subr.mxu0 0.0
    %405 = vmatpush1.msra.mxu0 0.0
    %406 = vmatprep.subr.mxu0 0.0
    %407 = vmatpush1.msra.mxu0 0.0
    %408 = vmatprep.subr.mxu0 0.0
    %409 = vmatpush1.msra.mxu0 0.0
    %410 = vmatprep.subr.mxu0 0.0
    %411 = vmatpush1.msra.mxu0 0.0
    %412 = vmatprep.subr.mxu0 0.0
    %413 = vmatpush1.msra.mxu0 0.0
    %414 = vmatprep.subr.mxu0 0.0
    %415 = vmatpush1.msra.mxu0 0.0
    %416 = vmatprep.subr.mxu0 0.0
    %417 = vmatpush1.msra.mxu0 0.0
    %418 = vmatprep.subr.mxu0 0.0
    %419 = vmatpush1.msra.mxu0 0.0
    %420 = vmatprep.subr.mxu0 0.0
    %421 = vmatpush1.msra.mxu0 0.0
    %422 = vmatprep.subr.mxu0 0.0
    %423 = vmatpush1.msra.mxu0 0.0
    %424 = vmatprep.subr.mxu0 0.0
    %425 = vmatpush1.msra.mxu0 0.0
    %426 = vmatprep.subr.mxu0 0.0
    %427 = vmatpush1.msra.mxu0 0.0
    %428 = vmatprep.subr.mxu0 0.0
    %429 = vmatpush1.msra.mxu0 0.0
    %430 = vmatprep.subr.mxu0 0.0
    %431 = vmatpush1.msra.mxu0 0.0
    %432 = vmatprep.subr.mxu0 0.0
    %433 = vmatpush1.msra.mxu0 0.0
    %434 = vmatprep.subr.mxu0 0.0
    %435 = vmatpush1.msra.mxu0 0.0
    %436 = vmatprep.subr.mxu0 0.0
    %437 = vmatpush1.msra.mxu0 0.0
    %438 = vmatprep.subr.mxu0 0.0
    %439 = vmatpush1.msra.mxu0 0.0
    %440 = vmatprep.subr.mxu0 0.0
    %441 = vmatpush1.msra.mxu0 0.0
    %442 = vmatprep.subr.mxu0 0.0
    %443 = vmatpush1.msra.mxu0 0.0
    %444 = vmatprep.subr.mxu0 0.0
    %445 = vmatpush1.msra.mxu0 0.0
    %446 = vmatprep.subr.mxu0 0.0
    %447 = vmatpush1.msra.mxu0 0.0
    %448 = vmatprep.subr.mxu0 0.0
    %449 = vmatpush1.msra.mxu0 0.0
    %450 = vmatprep.subr.mxu0 0.0
    %451 = vmatpush1.msra.mxu0 0.0
    %452 = vmatprep.mubr.f32.mxu0 0.0
    %453 = vmatmul.mubr.f32.gmra.mrb[0].mxu0 %v386
    %v454 = vpop.f32.mrb[0].mxu0
    %v455 = vadd.f32 %v382, %v454
    %v456 = vpop.f32.mrb[0].mxu0
    %457 = vdwg.mxu0
    %vm458 = vcmask 64512
    %459 = vst.msk [vmem:[#allocation2] sm:$0xff] %vm458, %v455
    // Predicated region
    $region38: #{tpu_custom_call.1} parent=1 // pred_check
      _
    $region39: #{tpu_custom_call.1} parent=1 // pred_check_branch
      %461 = sbr.rel (0) target = $region41
    $region40: #{tpu_custom_call.1} parent=1 // pred_region
      %s463 = ssub.s32 128, 128
      %464 = vsyncadd [#allocation3], %s463
      %s466 = sshll.u32 [#allocation2], 4
      %s467 = int_to_ptr.vmem [resolvable:$true] %s466
      %469 = dma.vmem_to_hbm [thread:$0]  %s467, 128, %s9, [#allocation3]
    $region41: #{tpu_custom_call.1} parent=1 // pred_fallthru
      _
    // Predicated region
    $region42: #{tpu_custom_call.1} parent=1 // pred_check
      _
    $region43: #{tpu_custom_call.1} parent=1 // pred_check_branch
      %471 = sbr.rel (0) target = $region45
    $region44: #{tpu_custom_call.1} parent=1 // pred_region
      %472 = dma.done [#allocation3], 128
    $region45: #{tpu_custom_call.1} parent=1 // pred_fallthru
      _
    %473 = vsyncpa [#allocation3], 1

</llo_original>
